<compile_context>
chip_gen: v7x
topology: tpu7x:2x2x1
jax: 0.10.0
libtpu: 0.0.40
codegen_flags: <defaults>
</compile_context>

<pallas_src>
import jax
import jax.numpy as jnp
from jax.experimental import pallas as pl
from jax.experimental.pallas import tpu as pltpu


def _round_up(v, m):
    return (v + m - 1) // m * m


def _pick_tile(total, pref, unit):
    """Largest multiple of `unit` <= pref that divides `total` (total % unit == 0)."""
    t = max(unit, min(_round_up(pref, unit), total))
    t = t // unit * unit
    while total % t != 0:
        t -= unit
    return t


def _pad2(a, rows, cols):
    """Zero-pad a 2-D array up to (rows, cols); no-op if already that shape."""
    if a.shape == (rows, cols):
        return a
    return jnp.zeros((rows, cols), a.dtype).at[: a.shape[0], : a.shape[1]].set(a)


def _ffn_kernel(x_ref, w1_ref, b1_ref, w2_ref, b2_ref, o_ref, acc_ref):
    """One (row-tile, d_ff-tile) step of  relu(x@w1+b1) @ w2 + b2  with f32 acc."""
    f = pl.program_id(1)

    @pl.when(f == 0)
    def _():
        acc_ref[...] = jnp.zeros_like(acc_ref)

    x = x_ref[...].astype(jnp.bfloat16)                       # bf16 MXU operand
    h = jnp.dot(x, w1_ref[...], preferred_element_type=jnp.float32) + b1_ref[...]
    h = jnp.maximum(h, 0.0)                                   # ReLU (dropout = id)
    acc_ref[...] += jnp.dot(
        h.astype(jnp.bfloat16), w2_ref[...], preferred_element_type=jnp.float32
    )

    @pl.when(f == pl.num_programs(1) - 1)
    def _():
        o_ref[...] = (acc_ref[...] + b2_ref[...]).astype(o_ref.dtype)


def prepare_ffn_params(w1, b1, w2, b2):
    """Pad to lane-dense (multiples of 128) and cast weights to bf16 — call ONCE,
    outside the per-token hot path."""
    d_model, d_ff = w1.shape
    assert w2.shape == (d_ff, d_model)
    Kp = _round_up(d_model, 128)
    Fp = _round_up(d_ff, 128)
    Np = Kp
    w1p = _pad2(w1.astype(jnp.bfloat16), Kp, Fp)
    b1p = _pad2(b1.reshape(1, d_ff).astype(jnp.float32), 1, Fp)
    w2p = _pad2(w2.astype(jnp.bfloat16), Fp, Np)
    b2p = _pad2(b2.reshape(1, d_model).astype(jnp.float32), 1, Np)
    return w1p, b1p, w2p, b2p


def positionwise_feed_forward(x, w1p, b1p, w2p, b2p, *, block_m=512, block_f=512):
    """x: (..., d_model) in its native dtype; w1p/b1p/w2p/b2p from
    prepare_ffn_params().  Returns (..., d_model) in x.dtype."""
    orig_shape = x.shape
    d_model = orig_shape[-1]
    Kp, Fp = w1p.shape
    Np = w2p.shape[1]
    assert Kp == _round_up(d_model, 128) and Np == Kp

    x2 = x.reshape(-1, d_model)          # keep native dtype (no forced f32 upcast)
    M = x2.shape[0]
    x_bytes = jnp.dtype(x2.dtype).itemsize

    # Row tile: sublane-aligned, and >= 2 row tiles when M allows (v7x dual-TC).
    tm = min(block_m, _round_up(M, 8))
    if M >= 16 and _round_up(M, tm) // tm < 2:
        tm = _round_up((_round_up(M, 8) + 1) // 2, 8)
    Mp = _round_up(M, tm)

    # d_ff tile: lane-dense and exactly dividing Fp (reduction axis, kept last).
    tf = _pick_tile(Fp, block_f, 128)

    xp = _pad2(x2, Mp, Kp)

    # VMEM budget (double-buffered pipelined operands + f32 accumulator),
    # capped at the v7x 64 MiB physical ceiling.
    vmem_bytes = (
        2 * tm * Kp * x_bytes        # x row tile
        + 2 * Kp * tf * 2            # w1 (bf16)
        + 2 * 1 * tf * 4             # b1
        + 2 * tf * Np * 2            # w2 (bf16)
        + 2 * 1 * Np * 4             # b2
        + 2 * tm * Np * x_bytes      # out
        + tm * Np * 4                # f32 accumulator scratch
        + tm * tf * 4                # headroom for the (tm, tf) intermediate
    )
    vmem_limit = min(max(2 * vmem_bytes, 32 * 1024 * 1024), 64 * 1024 * 1024)

    cost = pl.CostEstimate(
        flops=2 * Mp * Kp * Fp + 2 * Mp * Fp * Np,
        transcendentals=0,
        bytes_accessed=(
            Mp * Kp * x_bytes + Kp * Fp * 2 + Fp * 4 + Fp * Np * 2 + Np * 4
            + Mp * Np * x_bytes
        ),
    )

    out = pl.pallas_call(
        _ffn_kernel,
        out_shape=jax.ShapeDtypeStruct((Mp, Np), x2.dtype),
        grid=(Mp // tm, Fp // tf),
        in_specs=[
            pl.BlockSpec((tm, Kp), lambda i, f: (i, 0)),   # x row tile
            pl.BlockSpec((Kp, tf), lambda i, f: (0, f)),   # w1 d_ff slice (bf16)
            pl.BlockSpec((1, tf), lambda i, f: (0, f)),    # b1 d_ff slice
            pl.BlockSpec((tf, Np), lambda i, f: (f, 0)),   # w2 d_ff slice (bf16)
            pl.BlockSpec((1, Np), lambda i, f: (0, 0)),    # b2 (resident)
        ],
        out_specs=pl.BlockSpec((tm, Np), lambda i, f: (i, 0)),
        scratch_shapes=[pltpu.VMEM((tm, Np), jnp.float32)],
        compiler_params=pltpu.CompilerParams(
            dimension_semantics=("parallel", "arbitrary"),
            vmem_limit_bytes=int(vmem_limit),
        ),
        cost_estimate=cost,
    )(xp, w1p, b1p, w2p, b2p)

    return out[:M, :d_model].reshape(orig_shape)


# ---------------------------------- main -----------------------------------
if __name__ == "__main__":
    # Small shapes consistent with the module (batch=2, seq=8); feature dims
    # chosen lane-dense (d_model=128, d_ff=256).
    B, S, D_MODEL, D_FF = 2, 8, 128, 256

    root = jax.random.PRNGKey(0)
    kx, k1, k2, k3, k4 = jax.random.split(root, 5)

    x = jax.random.normal(kx, (B, S, D_MODEL), jnp.float32)
    w1 = 0.05 * jax.random.normal(k1, (D_MODEL, D_FF), jnp.float32)
    b1 = 0.05 * jax.random.normal(k2, (D_FF,), jnp.float32)
    w2 = 0.05 * jax.random.normal(k3, (D_FF, D_MODEL), jnp.float32)
    b2 = 0.05 * jax.random.normal(k4, (D_MODEL,), jnp.float32)

    # Pad / cast the weights ONCE, outside the hot path.
    params = prepare_ffn_params(w1, b1, w2, b2)
    params = tuple(jax.block_until_ready(p) for p in params)

    ffn = jax.jit(positionwise_feed_forward)
    out = jax.block_until_ready(ffn(x, *params))

    # Reference (pure JAX f32, eval-mode: dropout is identity).
    ref = jnp.dot(
        jnp.maximum(jnp.dot(x, w1, precision=jax.lax.Precision.HIGHEST) + b1, 0.0),
        w2,
        precision=jax.lax.Precision.HIGHEST,
    ) + b2

    assert out.shape == (B, S, D_MODEL), out.shape
    assert bool(jnp.all(jnp.isfinite(out)))
    # bf16 MXU operands vs f32 HIGHEST reference -> loosened tolerance.
    err = float(jnp.max(jnp.abs(out - ref)))
    assert bool(jnp.allclose(out, ref, rtol=3e-2, atol=3e-2)), err
    print("KERNEL_OK")
</pallas_src>

<mosaic_0001>
module attributes {stable_mosaic.version = 11 : i64} {
  func.func @_ffn_kernel(%arg0: i32, %arg1: i32, %arg2: memref<8x128xf32, #tpu.memory_space<vmem>>, %arg3: memref<128x256xbf16, #tpu.memory_space<vmem>>, %arg4: memref<1x256xf32, #tpu.memory_space<vmem>>, %arg5: memref<256x128xbf16, #tpu.memory_space<vmem>>, %arg6: memref<1x128xf32, #tpu.memory_space<vmem>>, %arg7: memref<8x128xf32, #tpu.memory_space<vmem>>, %arg8: memref<8x128xf32, #tpu.memory_space<vmem>>) attributes {dimension_semantics = [#tpu.dimension_semantics<parallel>, #tpu.dimension_semantics<arbitrary>], iteration_bounds = array<i64: 2, 1>, scalar_prefetch = 0 : i64, scratch_operands = 1 : i64, tpu.core_type = #tpu.core_type<tc>, window_params = [{transform_indices = @transform_0, window_bounds = array<i64: 8, 128>}, {transform_indices = @transform_1, window_bounds = array<i64: 128, 256>}, {transform_indices = @transform_2, window_bounds = array<i64: 1, 256>}, {transform_indices = @transform_3, window_bounds = array<i64: 256, 128>}, {pipeline_mode = #tpu.pipeline_mode<synchronous>, transform_indices = @transform_4, window_bounds = array<i64: 1, 128>}, {transform_indices = @transform_5, window_bounds = array<i64: 8, 128>}]} {
    %c0_i32 = arith.constant 0 : i32
    %0 = arith.cmpi eq, %arg1, %c0_i32 : i32
    %1 = arith.extui %0 : i1 to i32
    %c0_i32_0 = arith.constant 0 : i32
    %2 = arith.cmpi ne, %1, %c0_i32_0 : i32
    scf.if %2 {
      %cst_16 = arith.constant 0.000000e+00 : f32
      %21 = vector.broadcast %cst_16 : f32 to vector<8x128xf32>
      %c0_17 = arith.constant 0 : index
      %c0_18 = arith.constant 0 : index
      %22 = vector.load %arg8[%c0_17, %c0_18] : memref<8x128xf32, #tpu.memory_space<vmem>>, vector<8x128xf32>
      tpu.vector_store %arg8[%c0_17, %c0_18], %21 {strides = array<i32>} : memref<8x128xf32, #tpu.memory_space<vmem>>, vector<8x128xf32>,
    } else {
    }
    %c0 = arith.constant 0 : index
    %c0_1 = arith.constant 0 : index
    %3 = vector.load %arg2[%c0, %c0_1] : memref<8x128xf32, #tpu.memory_space<vmem>>, vector<8x128xf32>
    %4 = arith.truncf %3 : vector<8x128xf32> to vector<8x128xbf16>
    %c0_2 = arith.constant 0 : index
    %c0_3 = arith.constant 0 : index
    %5 = vector.load %arg3[%c0_2, %c0_3] : memref<128x256xbf16, #tpu.memory_space<vmem>>, vector<128x256xbf16>
    %cst = arith.constant dense<0.000000e+00> : vector<8x256xf32>
    %6 = tpu.matmul %4, %5, %cst {dimension_numbers = #tpu.dot_dimension_numbers<[1], [0], [0], [1], [0, 0, 1, 1], [], []>} : vector<8x128xbf16>, vector<128x256xbf16>, vector<8x256xf32> -> vector<8x256xf32>
    %c0_4 = arith.constant 0 : index
    %c0_5 = arith.constant 0 : index
    %7 = vector.load %arg4[%c0_4, %c0_5] : memref<1x256xf32, #tpu.memory_space<vmem>>, vector<1x256xf32>
    %8 = vector.broadcast %7 : vector<1x256xf32> to vector<8x256xf32>
    %9 = arith.addf %6, %8 : vector<8x256xf32>
    %cst_6 = arith.constant 0.000000e+00 : f32
    %10 = vector.broadcast %cst_6 : f32 to vector<8x256xf32>
    %11 = arith.maximumf %9, %10 : vector<8x256xf32>
    %c0_7 = arith.constant 0 : index
    %c0_8 = arith.constant 0 : index
    %12 = vector.load %arg8[%c0_7, %c0_8] : memref<8x128xf32, #tpu.memory_space<vmem>>, vector<8x128xf32>
    %13 = arith.truncf %11 : vector<8x256xf32> to vector<8x256xbf16>
    %c0_9 = arith.constant 0 : index
    %c0_10 = arith.constant 0 : index
    %14 = vector.load %arg5[%c0_9, %c0_10] : memref<256x128xbf16, #tpu.memory_space<vmem>>, vector<256x128xbf16>
    %cst_11 = arith.constant dense<0.000000e+00> : vector<8x128xf32>
    %15 = tpu.matmul %13, %14, %cst_11 {dimension_numbers = #tpu.dot_dimension_numbers<[1], [0], [0], [1], [0, 0, 1, 1], [], []>} : vector<8x256xbf16>, vector<256x128xbf16>, vector<8x128xf32> -> vector<8x128xf32>
    %16 = arith.addf %12, %15 : vector<8x128xf32>
    %c0_12 = arith.constant 0 : index
    %c0_13 = arith.constant 0 : index
    %17 = vector.load %arg8[%c0_12, %c0_13] : memref<8x128xf32, #tpu.memory_space<vmem>>, vector<8x128xf32>
    tpu.vector_store %arg8[%c0_12, %c0_13], %16 {strides = array<i32>} : memref<8x128xf32, #tpu.memory_space<vmem>>, vector<8x128xf32>,
    %c0_i32_14 = arith.constant 0 : i32
    %18 = arith.cmpi eq, %arg1, %c0_i32_14 : i32
    %19 = arith.extui %18 : i1 to i32
    %c0_i32_15 = arith.constant 0 : i32
    %20 = arith.cmpi ne, %19, %c0_i32_15 : i32
    scf.if %20 {
      %c0_16 = arith.constant 0 : index
      %c0_17 = arith.constant 0 : index
      %21 = vector.load %arg8[%c0_16, %c0_17] : memref<8x128xf32, #tpu.memory_space<vmem>>, vector<8x128xf32>
      %c0_18 = arith.constant 0 : index
      %c0_19 = arith.constant 0 : index
      %22 = vector.load %arg6[%c0_18, %c0_19] : memref<1x128xf32, #tpu.memory_space<vmem>>, vector<1x128xf32>
      %23 = vector.broadcast %22 : vector<1x128xf32> to vector<8x128xf32>
      %24 = arith.addf %21, %23 : vector<8x128xf32>
      %c0_20 = arith.constant 0 : index
      %c0_21 = arith.constant 0 : index
      %25 = vector.load %arg7[%c0_20, %c0_21] : memref<8x128xf32, #tpu.memory_space<vmem>>, vector<8x128xf32>
      tpu.vector_store %arg7[%c0_20, %c0_21], %24 {strides = array<i32>} : memref<8x128xf32, #tpu.memory_space<vmem>>, vector<8x128xf32>,
    } else {
    }
    return
  }
  func.func @transform_0(%arg0: i32, %arg1: i32) -> (i32, i32) {
    %c0_i32 = arith.constant 0 : i32
    %c0_i32_0 = arith.constant 0 : i32
    return %arg0, %c0_i32 : i32, i32
  }
  func.func @transform_1(%arg0: i32, %arg1: i32) -> (i32, i32) {
    %c0_i32 = arith.constant 0 : i32
    %c0_i32_0 = arith.constant 0 : i32
    return %c0_i32, %arg1 : i32, i32
  }
  func.func @transform_2(%arg0: i32, %arg1: i32) -> (i32, i32) {
    %c0_i32 = arith.constant 0 : i32
    %c0_i32_0 = arith.constant 0 : i32
    return %c0_i32, %arg1 : i32, i32
  }
  func.func @transform_3(%arg0: i32, %arg1: i32) -> (i32, i32) {
    %c0_i32 = arith.constant 0 : i32
    %c0_i32_0 = arith.constant 0 : i32
    return %arg1, %c0_i32 : i32, i32
  }
  func.func @transform_4(%arg0: i32, %arg1: i32) -> (i32, i32) {
    %c0_i32 = arith.constant 0 : i32
    %c0_i32_0 = arith.constant 0 : i32
    %c0_i32_1 = arith.constant 0 : i32
    return %c0_i32, %c0_i32_0 : i32, i32
  }
  func.func @transform_5(%arg0: i32, %arg1: i32) -> (i32, i32) {
    %c0_i32 = arith.constant 0 : i32
    %c0_i32_0 = arith.constant 0 : i32
    return %arg0, %c0_i32 : i32, i32
  }
}

</mosaic_0001>

<llo_original>
// kernel: positionwise_feed_forward.1
$region0: #{positionwise_feed_forward.1}
  #allocation0 [shape = 'u32[]', space=smem, size = 0x4, offset = 0x4, fixed_abs, tag = 'smem constant byte address 0x4 - core index']
  #allocation1 [shape = 'u32[144,128]{1,0:T(1,128)}', space=vmem, size = 0x12000, scoped, tag = 'internal scratch']
  #allocation2 [shape = 'f32[8,128]{1,0:T(8,128)}', space=vmem, size = 0x1000, scoped, tag = 'scratch operand']
  %s0 = inlined_call_operand.hbm [shape: f32[16,128], index: 0, kind: input, shape index: {}]
  %s1 = inlined_call_operand.hbm [shape: bf16[128,256], index: 1, kind: input, shape index: {}]
  %s2 = inlined_call_operand.vmem [shape: f32[1,256], index: 2, kind: input, shape index: {}]
  %s3 = inlined_call_operand.hbm [shape: bf16[256,128], index: 3, kind: input, shape index: {}]
  %s4 = inlined_call_operand.vmem [shape: f32[1,128], index: 4, kind: input, shape index: {}]
  %s5 = inlined_call_operand.hbm [shape: f32[16,128], index: 5, kind: output, shape index: {}]
  %s6 = sld [smem:[#allocation0]]
  $region73: #{positionwise_feed_forward.1} parent=0
    _
  %s8 = ssub.s32 1, %s6
  %s9 = scalar_select 0, %s8, %s6
  $region1: #{positionwise_feed_forward.1} parent=0
    #allocation3 [shape = 'u8[8192]{0}', space=vmem, size = 0x2000, scoped, tag = 'input window, operand 0']
    #allocation4 [shape = 's32[2]{0}', space=sflag, size = 0x8, scoped, tag = 'scoped memory for positionwise_feed_forward.1']
    #allocation5 [shape = 's32[2]{0}', space=sflag, size = 0x8, scoped, tag = 'scoped memory for positionwise_feed_forward.1']
    #allocation6 [shape = 'u8[65536]{0}', space=vmem, size = 0x10000, scoped, tag = 'input window, operand 1, single buffered']
    #allocation7 [shape = 's32[1]{0}', space=sflag, size = 0x4, scoped, tag = 'scoped memory for positionwise_feed_forward.1']
    #allocation8 [shape = 'u8[65536]{0}', space=vmem, size = 0x10000, scoped, tag = 'input window, operand 3, single buffered']
    #allocation9 [shape = 'u8[8192]{0}', space=vmem, size = 0x2000, scoped, tag = 'output window, operand 0']
    %10 = vsyncpa [#allocation4], 0
    %s11 = scalar_lea.sflag [#allocation4], 1
    %12 = vsyncpa %s11, 0
    %13 = vsyncpa [#allocation7], 0
    %14 = vsyncpa [#allocation5], 0
    %s15 = scalar_lea.sflag [#allocation5], 1
    %16 = vsyncpa %s15, 0
    loop: start=0, step=1, limit=4
    $region2: #{positionwise_feed_forward.1} parent=1 // loop_pre_header
      _
    $region3: #{positionwise_feed_forward.1} parent=1 // loop_header
      %s18 = sphi 0, %s22
      %p19 = scmp.ge.s32.totalorder %s18, 4
      %s25 = sphi 0, %s37
      %s26 = sphi 0, %s33
      %s27 = sphi 0, %s25
      %s28 = sphi 0, %s26
      %s29 = sphi 0, %s27
      %s30 = sphi 0, %s28
      %s40 = sphi 0, %s42
      %s43 = sphi 0, %s40
      %s44 = sphi 0, %s43
      %s60 = sphi 0, %s44
      %s66 = sphi 0, %s68
      %s69 = sphi 0, %s66
      %s70 = sphi 0, %s69
      %s86 = sphi 0, %s70
      %s92 = sphi 0, %s94
      %s95 = sphi 0, %s92
      %s96 = sphi 0, %s95
      %s112 = sphi 0, %s96
      %s118 = sphi 0, %s120
      %s121 = sphi 0, %s118
      %s122 = sphi 0, %s121
      %s138 = sphi 0, %s122
      %s142 = sphi 0, %s142
      %s144 = sphi 0, %s142
      %s145 = sphi 0, %s144
      %s159 = sphi 0, %s145
      %s165 = sphi 0, %s167
      %s168 = sphi 0, %s165
      %s169 = sphi 0, %s168
      %s185 = sphi 0, %s169
    $region4: #{positionwise_feed_forward.1} parent=1 // loop_header_branch
      %21 = sbr.rel (%p19) target = $region8
    $region5: #{positionwise_feed_forward.1} parent=1 // loop_body
      %s23 = ssub.s32 %s18, 1
      %s24 = ssub.s32 %s18, 2
      %s31 = sadd.s32 1, %s26
      %p32 = scmp.ge.s32.totalorder %s31, 1
      %s33 = scalar_select %p32, 0, %s31
      %s34 = sadd.s32 1, %s25
      %s35 = scalar_select %p32, %s34, %s25
      %p36 = scmp.ge.s32.totalorder %s35, 2
      %s37 = scalar_select %p36, 0, %s35
      %s38 = ssub.s32 %s25, %s37
      %p39 = scmp.eq.s32.totalorder %s38, 0
      %s41 = sadd.s32 %s40, 1
      %s42 = scalar_select %p39, %s40, %s41
      %p45 = pneg %p39
      %p46 = scmp.eq.s32.totalorder %s18, 1
      %p47 = por %p45, %p46
      %p48 = scmp.ne.s32.totalorder %s40, %s43
      %p49 = scmp.eq.s32.totalorder %s18, 0
      %p50 = por %p48, %p49
      %p51 = scmp.ne.s32.totalorder %s40, %s43
      %p52 = scmp.eq.s32.totalorder %s23, 1
      %p53 = por %p51, %p52
      %p54 = scmp.ne.s32.totalorder %s43, %s44
      %p55 = scmp.eq.s32.totalorder %s23, 0
      %p56 = por %p54, %p55
      %p57 = scmp.ne.s32.totalorder %s43, %s44
      %p58 = scmp.eq.s32.totalorder %s24, 1
      %p59 = por %p57, %p58
      %p61 = scmp.ne.s32.totalorder %s44, %s60
      %p62 = scmp.eq.s32.totalorder %s24, 0
      %p63 = por %p61, %p62
      %s64 = ssub.s32 %s26, %s33
      %p65 = scmp.eq.s32.totalorder %s64, 0
      %s67 = sadd.s32 %s66, 1
      %s68 = scalar_select %p65, %s66, %s67
      %p71 = pneg %p65
      %p72 = scmp.eq.s32.totalorder %s18, 1
      %p73 = por %p71, %p72
      %p74 = scmp.ne.s32.totalorder %s66, %s69
      %p75 = scmp.eq.s32.totalorder %s18, 0
      %p76 = por %p74, %p75
      %p77 = scmp.ne.s32.totalorder %s66, %s69
      %p78 = scmp.eq.s32.totalorder %s23, 1
      %p79 = por %p77, %p78
      %p80 = scmp.ne.s32.totalorder %s69, %s70
      %p81 = scmp.eq.s32.totalorder %s23, 0
      %p82 = por %p80, %p81
      %p83 = scmp.ne.s32.totalorder %s69, %s70
      %p84 = scmp.eq.s32.totalorder %s24, 1
      %p85 = por %p83, %p84
      %p87 = scmp.ne.s32.totalorder %s70, %s86
      %p88 = scmp.eq.s32.totalorder %s24, 0
      %p89 = por %p87, %p88
      %s90 = ssub.s32 %s26, %s33
      %p91 = scmp.eq.s32.totalorder %s90, 0
      %s93 = sadd.s32 %s92, 1
      %s94 = scalar_select %p91, %s92, %s93
      %p97 = pneg %p91
      %p98 = scmp.eq.s32.totalorder %s18, 1
      %p99 = por %p97, %p98
      %p100 = scmp.ne.s32.totalorder %s92, %s95
      %p101 = scmp.eq.s32.totalorder %s18, 0
      %p102 = por %p100, %p101
      %p103 = scmp.ne.s32.totalorder %s92, %s95
      %p104 = scmp.eq.s32.totalorder %s23, 1
      %p105 = por %p103, %p104
      %p106 = scmp.ne.s32.totalorder %s95, %s96
      %p107 = scmp.eq.s32.totalorder %s23, 0
      %p108 = por %p106, %p107
      %p109 = scmp.ne.s32.totalorder %s95, %s96
      %p110 = scmp.eq.s32.totalorder %s24, 1
      %p111 = por %p109, %p110
      %p113 = scmp.ne.s32.totalorder %s96, %s112
      %p114 = scmp.eq.s32.totalorder %s24, 0
      %p115 = por %p113, %p114
      %s116 = ssub.s32 %s26, %s33
      %p117 = scmp.eq.s32.totalorder %s116, 0
      %s119 = sadd.s32 %s118, 1
      %s120 = scalar_select %p117, %s118, %s119
      %p123 = pneg %p117
      %p124 = scmp.eq.s32.totalorder %s18, 1
      %p125 = por %p123, %p124
      %p126 = scmp.ne.s32.totalorder %s118, %s121
      %p127 = scmp.eq.s32.totalorder %s18, 0
      %p128 = por %p126, %p127
      %p129 = scmp.ne.s32.totalorder %s118, %s121
      %p130 = scmp.eq.s32.totalorder %s23, 1
      %p131 = por %p129, %p130
      %p132 = scmp.ne.s32.totalorder %s121, %s122
      %p133 = scmp.eq.s32.totalorder %s23, 0
      %p134 = por %p132, %p133
      %p135 = scmp.ne.s32.totalorder %s121, %s122
      %p136 = scmp.eq.s32.totalorder %s24, 1
      %p137 = por %p135, %p136
      %p139 = scmp.ne.s32.totalorder %s122, %s138
      %p140 = scmp.eq.s32.totalorder %s24, 0
      %p141 = por %p139, %p140
      %s143 = sadd.s32 %s142, 1
      %p146 = scmp.eq.s32.totalorder %s18, 1
      %p147 = scmp.ne.s32.totalorder %s142, %s144
      %p148 = scmp.eq.s32.totalorder %s18, 0
      %p149 = por %p147, %p148
      %p150 = scmp.ne.s32.totalorder %s142, %s144
      %p151 = scmp.eq.s32.totalorder %s23, 1
      %p152 = por %p150, %p151
      %p153 = scmp.ne.s32.totalorder %s144, %s145
      %p154 = scmp.eq.s32.totalorder %s23, 0
      %p155 = por %p153, %p154
      %p156 = scmp.ne.s32.totalorder %s144, %s145
      %p157 = scmp.eq.s32.totalorder %s24, 1
      %p158 = por %p156, %p157
      %p160 = scmp.ne.s32.totalorder %s145, %s159
      %p161 = scmp.eq.s32.totalorder %s24, 0
      %p162 = por %p160, %p161
      %s163 = ssub.s32 %s25, %s37
      %p164 = scmp.eq.s32.totalorder %s163, 0
      %s166 = sadd.s32 %s165, 1
      %s167 = scalar_select %p164, %s165, %s166
      %p170 = pneg %p164
      %p171 = scmp.eq.s32.totalorder %s18, 1
      %p172 = por %p170, %p171
      %p173 = scmp.ne.s32.totalorder %s165, %s168
      %p174 = scmp.eq.s32.totalorder %s18, 0
      %p175 = por %p173, %p174
      %p176 = scmp.ne.s32.totalorder %s165, %s168
      %p177 = scmp.eq.s32.totalorder %s23, 1
      %p178 = por %p176, %p177
      %p179 = scmp.ne.s32.totalorder %s168, %s169
      %p180 = scmp.eq.s32.totalorder %s23, 0
      %p181 = por %p179, %p180
      %p182 = scmp.ne.s32.totalorder %s168, %s169
      %p183 = scmp.eq.s32.totalorder %s24, 1
      %p184 = por %p182, %p183
      %p186 = scmp.ne.s32.totalorder %s169, %s185
      %p187 = scmp.eq.s32.totalorder %s24, 0
      %p188 = por %p186, %p187
      %p189 = scmp.le.s32.totalorder 1, %s18
      %p190 = scmp.lt.s32.totalorder %s18, 3
      %p191 = pnand %p189, %p190
      %p192 = pneg %p191
      // Predicated region
      $region9: #{positionwise_feed_forward.1} parent=5 // pred_check
        _
      $region10: #{positionwise_feed_forward.1} parent=5 // pred_check_branch
        %194 = sbr.rel (%p191) target = $region12
      $region11: #{positionwise_feed_forward.1} parent=5 // pred_region
        %s195 = ssub.s32 %s18, 1
        // Predicated region
        $region13: #{positionwise_feed_forward.1} parent=11 // pred_check
          %p196 = pneg %p82
        $region14: #{positionwise_feed_forward.1} parent=11 // pred_check_branch
          %198 = sbr.rel (%p196) target = $region16
        $region15: #{positionwise_feed_forward.1} parent=11 // pred_region
          %s199 = smul.u32 2, %s28
          %s201 = ssub.s32 2048, 2048
          %202 = vsyncadd [#allocation7], %s201
          %s203 = smul.addr %s199, 64
          %s204 = scalar_lea.hbm %s1, %s203
          %s205 = sshll.u32 [#allocation6], 4
          %s206 = int_to_ptr.vmem [resolvable:$true] %s205
          %211 = dma.hbm_to_vmem [thread:$0]  %s204, 2048, %s206, [#allocation7], 128, 128, 8
        $region16: #{positionwise_feed_forward.1} parent=11 // pred_fallthru
          _
        // Predicated region
        $region17: #{positionwise_feed_forward.1} parent=11 // pred_check
          %p212 = pneg %p108
        $region18: #{positionwise_feed_forward.1} parent=11 // pred_check_branch
          %214 = sbr.rel (%p212) target = $region20
        $region19: #{positionwise_feed_forward.1} parent=11 // pred_region
          %s215 = smul.u32 2, %s28
          %p216 = scmp.lt.s32.totalorder %s215, 1
          %s217 = scalar_select %p216, %s215, 1
          %s218 = scalar_lea.vmem %s2, %s217
          %s219 = smul.u32 2, %s28
        $region20: #{positionwise_feed_forward.1} parent=11 // pred_fallthru
          _
        // Predicated region
        $region21: #{positionwise_feed_forward.1} parent=11 // pred_check
          %p220 = pneg %p134
        $region22: #{positionwise_feed_forward.1} parent=11 // pred_check_branch
          %222 = sbr.rel (%p220) target = $region24
        $region23: #{positionwise_feed_forward.1} parent=11 // pred_region
          %s223 = smul.u32 32, %s28
          %s225 = ssub.s32 2048, 2048
          %226 = vsyncadd [#allocation7], %s225
          %s227 = smul.addr %s223, 64
          %s228 = scalar_lea.hbm %s3, %s227
          %s229 = sshll.u32 [#allocation8], 4
          %s230 = int_to_ptr.vmem [resolvable:$true] %s229
          %235 = dma.hbm_to_vmem [thread:$0]  %s228, 2048, %s230, [#allocation7], 64, 64, 4
        $region24: #{positionwise_feed_forward.1} parent=11 // pred_fallthru
          _
        // Predicated region
        $region25: #{positionwise_feed_forward.1} parent=11 // pred_check
          %p236 = pneg %p155
        $region26: #{positionwise_feed_forward.1} parent=11 // pred_check_branch
          %238 = sbr.rel (%p236) target = $region28
        $region27: #{positionwise_feed_forward.1} parent=11 // pred_region
          _
        $region28: #{positionwise_feed_forward.1} parent=11 // pred_fallthru
          _
      $region12: #{positionwise_feed_forward.1} parent=5 // pred_fallthru
        _
      %p239 = scmp.lt.s32.totalorder %s18, 2
      // Predicated region
      $region29: #{positionwise_feed_forward.1} parent=5 // pred_check
        %p240 = pneg %p239
      $region30: #{positionwise_feed_forward.1} parent=5 // pred_check_branch
        %242 = sbr.rel (%p240) target = $region32
      $region31: #{positionwise_feed_forward.1} parent=5 // pred_region
        // Predicated region
        $region33: #{positionwise_feed_forward.1} parent=31 // pred_check
          %p243 = pneg %p50
        $region34: #{positionwise_feed_forward.1} parent=31 // pred_check_branch
          %245 = sbr.rel (%p243) target = $region36
        $region35: #{positionwise_feed_forward.1} parent=31 // pred_region
          %s246 = sand.u32 %s40, 1
          %s247 = scalar_lea.sflag [#allocation4], %s246
          %s248 = sand.u32 %s40, 1
          %s249 = smul.addr %s248, 8
          %s250 = scalar_lea.vmem [#allocation3], %s249
          %s252 = ssub.s32 128, 128
          %253 = vsyncadd %s247, %s252
          %s254 = smul.addr %s25, 128
          %s255 = scalar_lea.hbm %s0, %s254
          %s257 = sshll.u32 %s250, 4
          %s258 = int_to_ptr.vmem [resolvable:$true] %s257
          %260 = dma.hbm_to_vmem [thread:$0]  %s255, 128, %s258, %s247
        $region36: #{positionwise_feed_forward.1} parent=31 // pred_fallthru
          _
      $region32: #{positionwise_feed_forward.1} parent=5 // pred_fallthru
        _
      %p261 = scmp.le.s32.totalorder 1, %s18
      %p262 = scmp.lt.s32.totalorder %s18, 3
      %p263 = pnand %p261, %p262
      %p264 = pneg %p263
      // Predicated region
      $region37: #{positionwise_feed_forward.1} parent=5 // pred_check
        _
      $region38: #{positionwise_feed_forward.1} parent=5 // pred_check_branch
        %266 = sbr.rel (%p263) target = $region40
      $region39: #{positionwise_feed_forward.1} parent=5 // pred_region
        %s267 = ssub.s32 %s18, 1
        %s268 = sand.u32 %s43, 1
        %s269 = scalar_lea.sflag [#allocation4], %s268
        %s270 = sand.u32 %s43, 1
        %s271 = smul.addr %s270, 8
        %s272 = scalar_lea.vmem [#allocation3], %s271
        // Predicated region
        $region41: #{positionwise_feed_forward.1} parent=39 // pred_check
          %p273 = pneg %p56
        $region42: #{positionwise_feed_forward.1} parent=39 // pred_check_branch
          %275 = sbr.rel (%p273) target = $region44
        $region43: #{positionwise_feed_forward.1} parent=39 // pred_region
          %276 = dma.done %s269, 128
        $region44: #{positionwise_feed_forward.1} parent=39 // pred_fallthru
          _
        // Predicated region
        $region45: #{positionwise_feed_forward.1} parent=39 // pred_check
          %p277 = pneg %p82
        $region46: #{positionwise_feed_forward.1} parent=39 // pred_check_branch
          %279 = sbr.rel (%p277) target = $region48
        $region47: #{positionwise_feed_forward.1} parent=39 // pred_region
          %280 = dma.done [#allocation7], 2048
        $region48: #{positionwise_feed_forward.1} parent=39 // pred_fallthru
          _
        // Predicated region
        $region49: #{positionwise_feed_forward.1} parent=39 // pred_check
          %p281 = pneg %p134
        $region50: #{positionwise_feed_forward.1} parent=39 // pred_check_branch
          %283 = sbr.rel (%p281) target = $region52
        $region51: #{positionwise_feed_forward.1} parent=39 // pred_region
          %284 = dma.done [#allocation7], 2048
        $region52: #{positionwise_feed_forward.1} parent=39 // pred_fallthru
          _
        %s285 = sand.u32 %s43, 1
        %s286 = scalar_lea.sflag [#allocation4], %s285
        %s287 = sand.u32 %s43, 1
        %s288 = smul.addr %s287, 8
        %s289 = scalar_lea.vmem [#allocation3], %s288
        %p290 = pneg %p56
        %p291 = pneg %p53
        %p292 = pneg %p82
        %p293 = pneg %p79
        %s294 = smul.u32 2, %s28
        %p295 = scmp.lt.s32.totalorder %s294, 1
        %s296 = scalar_select %p295, %s294, 1
        %s297 = scalar_lea.vmem %s2, %s296
        %p298 = pneg %p108
        %p299 = pneg %p105
        %p300 = pneg %p134
        %p301 = pneg %p131
        %p302 = pneg %p155
        %p303 = pneg %p152
        %p304 = pneg %p181
        %p305 = pneg %p178
        %s306 = sand.u32 %s168, 1
        %s307 = scalar_lea.sflag [#allocation5], %s306
        %s308 = sand.u32 %s168, 1
        %s309 = smul.addr %s308, 8
        %s310 = scalar_lea.vmem [#allocation9], %s309
        %s311 = smul.u32 2, %s28
        %s312 = smul.u32 2, %s28
        %p313 = scmp.lt.s32.totalorder %s312, 1
        %s314 = scalar_select %p313, %s312, 1
        %s315 = scalar_lea.vmem %s2, %s314
        %s316 = smul.u32 2, %s28
        %s317 = smul.u32 32, %s28
        %p319 = scmp.eq.s32.totalorder %s28, 0
        // Predicated region
        $region53: #{positionwise_feed_forward.1} parent=39 // pred_check
          %p320 = pneg %p319
        $region54: #{positionwise_feed_forward.1} parent=39 // pred_check_branch
          %322 = sbr.rel (%p320) target = $region56
        $region55: #{positionwise_feed_forward.1} parent=39 // pred_region
          %323 = vst [vmem:[#allocation2] sm:$0xff] 0.0
        $region56: #{positionwise_feed_forward.1} parent=39 // pred_fallthru
          _
        %v324 = vld [vmem:[%s272] sm:$0xff]
        %v325 = vpack.c.bf16 %v324, %v324
        %v326 = vld [vmem:[#allocation6] sm:$0xff]
        %v327 = vld [vmem:[#allocation6 + $0x8] sm:$0xff]
        %v328 = vld [vmem:[#allocation6 + $0x10] sm:$0xff]
        %v329 = vld [vmem:[#allocation6 + $0x18] sm:$0xff]
        %v330 = vld [vmem:[#allocation6 + $0x20] sm:$0xff]
        %v331 = vld [vmem:[#allocation6 + $0x28] sm:$0xff]
        %v332 = vld [vmem:[#allocation6 + $0x30] sm:$0xff]
        %v333 = vld [vmem:[#allocation6 + $0x38] sm:$0xff]
        %v334 = vld [vmem:[#allocation6 + $0x40] sm:$0xff]
        %v335 = vld [vmem:[#allocation6 + $0x48] sm:$0xff]
        %v336 = vld [vmem:[#allocation6 + $0x50] sm:$0xff]
        %v337 = vld [vmem:[#allocation6 + $0x58] sm:$0xff]
        %v338 = vld [vmem:[#allocation6 + $0x60] sm:$0xff]
        %v339 = vld [vmem:[#allocation6 + $0x68] sm:$0xff]
        %v340 = vld [vmem:[#allocation6 + $0x70] sm:$0xff]
        %v341 = vld [vmem:[#allocation6 + $0x78] sm:$0xff]
        %v342 = vld [vmem:[%s315] sm:$0x3]
        %v344 = vlaneseq
        %v345 = vshrl.u32 %v344, 7
        %v346 = vsub.s32 0, %v345
        %v347 = vrot.slane %v342, %v346
        %v348 = vlaneseq
        %v349 = vshrl.u32 %v348, 7
        %v350 = vsub.s32 1, %v349
        %v351 = vrot.slane %v342, %v350
        %v370 = vunpack.c.l.b16 %v326
        %v371 = vunpack.c.h.b16 %v326
        %v372 = vunpack.c.l.b16 %v327
        %v373 = vunpack.c.h.b16 %v327
        %v374 = vunpack.c.l.b16 %v328
        %v375 = vunpack.c.h.b16 %v328
        %v376 = vunpack.c.l.b16 %v329
        %v377 = vunpack.c.h.b16 %v329
        %v378 = vunpack.c.l.b16 %v330
        %v379 = vunpack.c.h.b16 %v330
        %v380 = vunpack.c.l.b16 %v331
        %v381 = vunpack.c.h.b16 %v331
        %v382 = vunpack.c.l.b16 %v332
        %v383 = vunpack.c.h.b16 %v332
        %v384 = vunpack.c.l.b16 %v333
        %v385 = vunpack.c.h.b16 %v333
        %v386 = vunpack.c.l.b16 %v334
        %v387 = vunpack.c.h.b16 %v334
        %v388 = vunpack.c.l.b16 %v335
        %v389 = vunpack.c.h.b16 %v335
        %v390 = vunpack.c.l.b16 %v336
        %v391 = vunpack.c.h.b16 %v336
        %v392 = vunpack.c.l.b16 %v337
        %v393 = vunpack.c.h.b16 %v337
        %v394 = vunpack.c.l.b16 %v338
        %v395 = vunpack.c.h.b16 %v338
        %v396 = vunpack.c.l.b16 %v339
        %v397 = vunpack.c.h.b16 %v339
        %v398 = vunpack.c.l.b16 %v340
        %v399 = vunpack.c.h.b16 %v340
        %v400 = vunpack.c.l.b16 %v341
        %v401 = vunpack.c.h.b16 %v341
        %v402 = vpack.c.b16 %v372, %v370
        %v403 = vpack.c.b16 %v373, %v371
        %v404 = vpack.c.b16 %v376, %v374
        %v405 = vpack.c.b16 %v377, %v375
        %v406 = vpack.c.b16 %v380, %v378
        %v407 = vpack.c.b16 %v381, %v379
        %v408 = vpack.c.b16 %v384, %v382
        %v409 = vpack.c.b16 %v385, %v383
        %v410 = vpack.c.b16 %v388, %v386
        %v411 = vpack.c.b16 %v389, %v387
        %v412 = vpack.c.b16 %v392, %v390
        %v413 = vpack.c.b16 %v393, %v391
        %v414 = vpack.c.b16 %v396, %v394
        %v415 = vpack.c.b16 %v397, %v395
        %v416 = vpack.c.b16 %v400, %v398
        %v417 = vpack.c.b16 %v401, %v399
        %434 = vmatprep.subr.bf16.mxu0 %v403
        %435 = vmatpush1.bf16.msra.mxu0 %v402
        %436 = vmatprep.subr.bf16.mxu0 %v405
        %437 = vmatpush1.bf16.msra.mxu0 %v404
        %438 = vmatprep.subr.bf16.mxu0 %v407
        %439 = vmatpush1.bf16.msra.mxu0 %v406
        %440 = vmatprep.subr.bf16.mxu0 %v409
        %441 = vmatpush1.bf16.msra.mxu0 %v408
        %442 = vmatprep.subr.bf16.mxu0 %v411
        %443 = vmatpush1.bf16.msra.mxu0 %v410
        %444 = vmatprep.subr.bf16.mxu0 %v413
        %445 = vmatpush1.bf16.msra.mxu0 %v412
        %446 = vmatprep.subr.bf16.mxu0 %v415
        %447 = vmatpush1.bf16.msra.mxu0 %v414
        %448 = vmatprep.subr.bf16.mxu0 %v417
        %449 = vmatpush1.bf16.msra.mxu0 %v416
        %450 = vmatprep.subr.bf16.mxu0 0
        %451 = vmatpush1.bf16.msra.mxu0 0
        %452 = vmatprep.subr.bf16.mxu0 0
        %453 = vmatpush1.bf16.msra.mxu0 0
        %454 = vmatprep.subr.bf16.mxu0 0
        %455 = vmatpush1.bf16.msra.mxu0 0
        %456 = vmatprep.subr.bf16.mxu0 0
        %457 = vmatpush1.bf16.msra.mxu0 0
        %458 = vmatprep.subr.bf16.mxu0 0
        %459 = vmatpush1.bf16.msra.mxu0 0
        %460 = vmatprep.subr.bf16.mxu0 0
        %461 = vmatpush1.bf16.msra.mxu0 0
        %462 = vmatprep.subr.bf16.mxu0 0
        %463 = vmatpush1.bf16.msra.mxu0 0
        %464 = vmatprep.subr.bf16.mxu0 0
        %465 = vmatpush1.bf16.msra.mxu0 0
        %466 = vmatprep.mubr.bf16.mxu0 0
        %467 = vmatmul.mubr.bf16.gmra.mrb[0].mxu0 %v325
        %v468 = vpop.f32.mrb[0].mxu0
        %v469 = vadd.f32 %v347, %v468
        %v470 = vpop.f32.mrb[0].mxu0
        %v471 = vadd.f32 %v351, %v470
        %v472 = vpop.f32.mrb[0].mxu0
        %v473 = vpop.f32.mrb[0].mxu0
        %474 = vdwg.mxu0
        %v475 = vmax.f32 %v469, 0.0
        %v476 = vmax.f32 %v471, 0.0
        %v477 = vld [vmem:[#allocation2] sm:$0xff]
        %v478 = vpack.c.bf16 %v475, %v475
        %v479 = vpack.c.bf16 %v476, %v476
        %v480 = vld [vmem:[#allocation8] sm:$0xf]
        %v481 = vld [vmem:[#allocation8 + $0x4] sm:$0xf]
        %v482 = vld [vmem:[#allocation8 + $0x8] sm:$0xf]
        %v483 = vld [vmem:[#allocation8 + $0xc] sm:$0xf]
        %v484 = vld [vmem:[#allocation8 + $0x10] sm:$0xf]
        %v485 = vld [vmem:[#allocation8 + $0x14] sm:$0xf]
        %v486 = vld [vmem:[#allocation8 + $0x18] sm:$0xf]
        %v487 = vld [vmem:[#allocation8 + $0x1c] sm:$0xf]
        %v488 = vld [vmem:[#allocation8 + $0x20] sm:$0xf]
        %v489 = vld [vmem:[#allocation8 + $0x24] sm:$0xf]
        %v490 = vld [vmem:[#allocation8 + $0x28] sm:$0xf]
        %v491 = vld [vmem:[#allocation8 + $0x2c] sm:$0xf]
        %v492 = vld [vmem:[#allocation8 + $0x30] sm:$0xf]
        %v493 = vld [vmem:[#allocation8 + $0x34] sm:$0xf]
        %v494 = vld [vmem:[#allocation8 + $0x38] sm:$0xf]
        %v495 = vld [vmem:[#allocation8 + $0x3c] sm:$0xf]
        %v496 = vld [vmem:[#allocation8 + $0x40] sm:$0xf]
        %v497 = vld [vmem:[#allocation8 + $0x44] sm:$0xf]
        %v498 = vld [vmem:[#allocation8 + $0x48] sm:$0xf]
        %v499 = vld [vmem:[#allocation8 + $0x4c] sm:$0xf]
        %v500 = vld [vmem:[#allocation8 + $0x50] sm:$0xf]
        %v501 = vld [vmem:[#allocation8 + $0x54] sm:$0xf]
        %v502 = vld [vmem:[#allocation8 + $0x58] sm:$0xf]
        %v503 = vld [vmem:[#allocation8 + $0x5c] sm:$0xf]
        %v504 = vld [vmem:[#allocation8 + $0x60] sm:$0xf]
        %v505 = vld [vmem:[#allocation8 + $0x64] sm:$0xf]
        %v506 = vld [vmem:[#allocation8 + $0x68] sm:$0xf]
        %v507 = vld [vmem:[#allocation8 + $0x6c] sm:$0xf]
        %v508 = vld [vmem:[#allocation8 + $0x70] sm:$0xf]
        %v509 = vld [vmem:[#allocation8 + $0x74] sm:$0xf]
        %v510 = vld [vmem:[#allocation8 + $0x78] sm:$0xf]
        %v511 = vld [vmem:[#allocation8 + $0x7c] sm:$0xf]
        %v544 = vunpack.c.l.b16 %v480
        %v545 = vunpack.c.l.b16 %v481
        %v546 = vunpack.c.l.b16 %v482
        %v547 = vunpack.c.l.b16 %v483
        %v548 = vunpack.c.l.b16 %v484
        %v549 = vunpack.c.l.b16 %v485
        %v550 = vunpack.c.l.b16 %v486
        %v551 = vunpack.c.l.b16 %v487
        %v552 = vunpack.c.l.b16 %v488
        %v553 = vunpack.c.l.b16 %v489
        %v554 = vunpack.c.l.b16 %v490
        %v555 = vunpack.c.l.b16 %v491
        %v556 = vunpack.c.l.b16 %v492
        %v557 = vunpack.c.l.b16 %v493
        %v558 = vunpack.c.l.b16 %v494
        %v559 = vunpack.c.l.b16 %v495
        %v560 = vunpack.c.l.b16 %v496
        %v561 = vunpack.c.l.b16 %v497
        %v562 = vunpack.c.l.b16 %v498
        %v563 = vunpack.c.l.b16 %v499
        %v564 = vunpack.c.l.b16 %v500
        %v565 = vunpack.c.l.b16 %v501
        %v566 = vunpack.c.l.b16 %v502
        %v567 = vunpack.c.l.b16 %v503
        %v568 = vunpack.c.l.b16 %v504
        %v569 = vunpack.c.l.b16 %v505
        %v570 = vunpack.c.l.b16 %v506
        %v571 = vunpack.c.l.b16 %v507
        %v572 = vunpack.c.l.b16 %v508
        %v573 = vunpack.c.l.b16 %v509
        %v574 = vunpack.c.l.b16 %v510
        %v575 = vunpack.c.l.b16 %v511
        %v576 = vpack.c.b16 %v545, %v544
        %v577 = vpack.c.b16 %v547, %v546
        %v578 = vpack.c.b16 %v549, %v548
        %v579 = vpack.c.b16 %v551, %v550
        %v580 = vpack.c.b16 %v553, %v552
        %v581 = vpack.c.b16 %v555, %v554
        %v582 = vpack.c.b16 %v557, %v556
        %v583 = vpack.c.b16 %v559, %v558
        %v584 = vpack.c.b16 %v561, %v560
        %v585 = vpack.c.b16 %v563, %v562
        %v586 = vpack.c.b16 %v565, %v564
        %v587 = vpack.c.b16 %v567, %v566
        %v588 = vpack.c.b16 %v569, %v568
        %v589 = vpack.c.b16 %v571, %v570
        %v590 = vpack.c.b16 %v573, %v572
        %v591 = vpack.c.b16 %v575, %v574
        %608 = vmatprep.subr.bf16.mxu0 0
        %609 = vmatpush1.bf16.msra.mxu0 %v576
        %610 = vmatprep.subr.bf16.mxu0 0
        %611 = vmatpush1.bf16.msra.mxu0 %v577
        %612 = vmatprep.subr.bf16.mxu0 0
        %613 = vmatpush1.bf16.msra.mxu0 %v578
        %614 = vmatprep.subr.bf16.mxu0 0
        %615 = vmatpush1.bf16.msra.mxu0 %v579
        %616 = vmatprep.subr.bf16.mxu0 0
        %617 = vmatpush1.bf16.msra.mxu0 %v580
        %618 = vmatprep.subr.bf16.mxu0 0
        %619 = vmatpush1.bf16.msra.mxu0 %v581
        %620 = vmatprep.subr.bf16.mxu0 0
        %621 = vmatpush1.bf16.msra.mxu0 %v582
        %622 = vmatprep.subr.bf16.mxu0 0
        %623 = vmatpush1.bf16.msra.mxu0 %v583
        %624 = vmatprep.subr.bf16.mxu0 0
        %625 = vmatpush1.bf16.msra.mxu0 %v584
        %626 = vmatprep.subr.bf16.mxu0 0
        %627 = vmatpush1.bf16.msra.mxu0 %v585
        %628 = vmatprep.subr.bf16.mxu0 0
        %629 = vmatpush1.bf16.msra.mxu0 %v586
        %630 = vmatprep.subr.bf16.mxu0 0
        %631 = vmatpush1.bf16.msra.mxu0 %v587
        %632 = vmatprep.subr.bf16.mxu0 0
        %633 = vmatpush1.bf16.msra.mxu0 %v588
        %634 = vmatprep.subr.bf16.mxu0 0
        %635 = vmatpush1.bf16.msra.mxu0 %v589
        %636 = vmatprep.subr.bf16.mxu0 0
        %637 = vmatpush1.bf16.msra.mxu0 %v590
        %638 = vmatprep.subr.bf16.mxu0 0
        %639 = vmatpush1.bf16.msra.mxu0 %v591
        %640 = vmatprep.mubr.bf16.mxu0 %v479
        %641 = vmatmul.mubr.bf16.gmra.mrb[0].mxu0 %v478
        %v642 = vpop.f32.mrb[0].mxu0
        %v643 = vadd.f32 0.0, %v642
        %v644 = vpop.f32.mrb[0].mxu0
        %v645 = vpop.f32.mrb[0].mxu0
        %v646 = vpop.f32.mrb[0].mxu0
        %647 = vdwg.mxu0
        %v648 = vadd.f32 %v477, %v643
        %649 = vst [vmem:[#allocation2] sm:$0xff] %v648
        // Predicated region
        $region57: #{positionwise_feed_forward.1} parent=39 // pred_check
          %p650 = pneg %p319
        $region58: #{positionwise_feed_forward.1} parent=39 // pred_check_branch
          %652 = sbr.rel (%p650) target = $region60
        $region59: #{positionwise_feed_forward.1} parent=39 // pred_region
          %v653 = vld [vmem:[#allocation2] sm:$0xff]
          %v654 = vld [vmem:[%s4] sm:$0x1]
          %v656 = vlaneseq
          %v657 = vshrl.u32 %v656, 7
          %v658 = vsub.s32 0, %v657
          %v659 = vrot.slane %v654, %v658
          %v661 = vadd.f32 %v653, %v659
          %662 = vst [vmem:[%s310] sm:$0xff] %v661
        $region60: #{positionwise_feed_forward.1} parent=39 // pred_fallthru
          _
        %s663 = sand.u32 %s168, 1
        %s664 = scalar_lea.sflag [#allocation5], %s663
        %s665 = sand.u32 %s168, 1
        %s666 = smul.addr %s665, 8
        %s667 = scalar_lea.vmem [#allocation9], %s666
        // Predicated region
        $region61: #{positionwise_feed_forward.1} parent=39 // pred_check
          %p668 = pneg %p178
        $region62: #{positionwise_feed_forward.1} parent=39 // pred_check_branch
          %670 = sbr.rel (%p668) target = $region64
        $region63: #{positionwise_feed_forward.1} parent=39 // pred_region
          %s672 = ssub.s32 128, 128
          %673 = vsyncadd %s664, %s672
          %s674 = smul.addr %s27, 128
          %s675 = scalar_lea.hbm %s5, %s674
          %s677 = sshll.u32 %s667, 4
          %s678 = int_to_ptr.vmem [resolvable:$true] %s677
          %680 = dma.vmem_to_hbm [thread:$0]  %s678, 128, %s675, %s664
        $region64: #{positionwise_feed_forward.1} parent=39 // pred_fallthru
          _
      $region40: #{positionwise_feed_forward.1} parent=5 // pred_fallthru
        _
      %p681 = scmp.le.s32.totalorder 2, %s18
      // Predicated region
      $region65: #{positionwise_feed_forward.1} parent=5 // pred_check
        %p682 = pneg %p681
      $region66: #{positionwise_feed_forward.1} parent=5 // pred_check_branch
        %684 = sbr.rel (%p682) target = $region68
      $region67: #{positionwise_feed_forward.1} parent=5 // pred_region
        %s685 = ssub.s32 %s18, 2
        // Predicated region
        $region69: #{positionwise_feed_forward.1} parent=67 // pred_check
          %p686 = pneg %p184
        $region70: #{positionwise_feed_forward.1} parent=67 // pred_check_branch
          %688 = sbr.rel (%p686) target = $region72
        $region71: #{positionwise_feed_forward.1} parent=67 // pred_region
          %s689 = sand.u32 %s169, 1
          %s690 = scalar_lea.sflag [#allocation5], %s689
          %s691 = sand.u32 %s169, 1
          %s692 = smul.addr %s691, 8
          %s693 = scalar_lea.vmem [#allocation9], %s692
          %694 = dma.done %s690, 128
        $region72: #{positionwise_feed_forward.1} parent=67 // pred_fallthru
          _
      $region68: #{positionwise_feed_forward.1} parent=5 // pred_fallthru
        _
    $region6: #{positionwise_feed_forward.1} parent=1 // loop_footer
      %s22 = sadd.s32 1, %s18
    $region7: #{positionwise_feed_forward.1} parent=1 // loop_footer_branch
      %17 = sbr.rel target = $region3
    $region8: #{positionwise_feed_forward.1} parent=1 // loop_exit
      _
    %695 = vsyncpa [#allocation4], 1
    %s696 = scalar_lea.sflag [#allocation4], 1
    %697 = vsyncpa %s696, 1
    %698 = vsyncpa [#allocation7], 1
    %699 = vsyncpa [#allocation5], 1
    %s700 = scalar_lea.sflag [#allocation5], 1
    %701 = vsyncpa %s700, 1

</llo_original>
